<compile_context>
chip_gen: v7x
topology: tpu7x:2x2x1
jax: 0.10.0
libtpu: 0.0.40
codegen_flags: <defaults>
</compile_context>

<pallas_src>
import jax
import jax.numpy as jnp
from jax.experimental import pallas as pl
from jax.experimental.pallas import tpu as pltpu


def _copy_kernel(x_ref, o_ref):
    # Pure lane-dense identity copy of one (tb, tf) tile: vld/vst at HBM roofline.
    o_ref[...] = x_ref[...]


def _largest_aligned_divisor(dim, unit, cap):
    """Largest d with d % unit == 0, dim % d == 0 and unit <= d <= max(unit, cap).

    O(sqrt(dim/unit)) trace-time divisor enumeration. Returns None if dim is
    not a multiple of unit.
    """
    if dim % unit != 0:
        return None
    m = dim // unit
    cap_m = max(1, min(m, cap // unit))
    best = 1
    i = 1
    while i * i <= m:
        if m % i == 0:
            for d in (i, m // i):
                if d <= cap_m and d > best:
                    best = d
        i += 1
    return best * unit


def _choose_view(n, flat, sub_unit):
    """Pick a lane-dense 2D view (rows, cols) of the contiguous n*flat buffer."""
    total = n * flat
    if n % sub_unit == 0 and flat % 128 == 0:
        return n, flat  # natural view is already fully aligned
    if total % 128 != 0:
        # TODO(synk): no lane-dense reinterpretation exists (total elements not
        # a multiple of 128); fall back to the natural view with full-extent
        # blocks (masked stores, but correct; only hit by very ragged shapes).
        return n, flat
    # Enumerate divisors of total that are multiples of 128 (O(sqrt(total/128))).
    m = total // 128
    cands = set()
    i = 1
    while i * i <= m:
        if m % i == 0:
            cands.add(i * 128)
            cands.add((m // i) * 128)
        i += 1
    # Prefer column counts whose row count stays sublane-aligned; among those
    # take the widest lane extent.
    good = [c for c in cands if (total // c) % sub_unit == 0]
    cols = max(good) if good else max(cands)
    return total // cols, cols


def _pick_tiles(rows, cols, sub_unit, itemsize, max_tile_bytes):
    """(tb, tf): fix the lane tile first, then grow the row tile to the budget."""
    budget_elems = max(1, max_tile_bytes // itemsize)
    min_tb = sub_unit if rows % sub_unit == 0 else rows
    if cols % 128 == 0:
        tf_cap = max(128, budget_elems // max(1, min_tb))
        tf = _largest_aligned_divisor(cols, 128, tf_cap)
    else:
        tf = cols  # full-extent block (always legal)
    if rows % sub_unit == 0:
        tb_cap = max(sub_unit, budget_elems // max(1, tf))
        tb = _largest_aligned_divisor(rows, sub_unit, tb_cap)
    else:
        tb = rows  # full-extent block (always legal)
    return tb, tf


def _maybe_split_for_megacore(rows, cols, tb, tf, sub_unit, itemsize):
    """Expose >= 2 tiles on a parallel axis for medium/large copies (v7x 2 TCs)."""
    if rows * cols * itemsize < (1 << 20):
        return tb, tf
    if rows // tb >= 2 or cols // tf >= 2:
        return tb, tf
    if tf % 256 == 0:
        return tb, tf // 2
    if tb % (2 * sub_unit) == 0:
        return tb // 2, tf
    return tb, tf


def flatten(x, *, max_tile_bytes=None, donate=False, use_kernel=True):
    """Pallas equivalent of torch Flatten: (N, ...) -> (N, prod(...))."""
    n = x.shape[0]
    flat = 1
    for d in x.shape[1:]:
        flat *= d

    if not use_kernel or n == 0 or flat == 0:
        # Structurally cheapest path: metadata-only reshape, zero HBM traffic.
        return x.reshape(n, flat)

    total = n * flat
    itemsize = jnp.dtype(x.dtype).itemsize
    sub_unit = {1: 32, 2: 16, 4: 8}.get(itemsize, 8)

    # Per-buffer tile budget derived from the chip's VMEM capacity: ~8 MiB on
    # 128 MiB parts (v5e/v6e), ~4 MiB on v7x (64 MiB). With 4 live buffers
    # (in + out, double-buffered) this stays inside scoped VMEM everywhere.
    try:
        vmem_cap = int(pltpu.get_tpu_info().vmem_capacity_bytes)
    except Exception:  # conservative fallback if the query is unavailable
        vmem_cap = 64 * 1024 * 1024
    if max_tile_bytes is None:
        max_tile_bytes = max(512 * 1024, min(8 * 1024 * 1024, vmem_cap // 16))

    rows, cols = _choose_view(n, flat, sub_unit)
    tb, tf = _pick_tiles(rows, cols, sub_unit, itemsize, max_tile_bytes)
    tb, tf = _maybe_split_for_megacore(rows, cols, tb, tf, sub_unit, itemsize)

    tile_bytes = tb * tf * itemsize
    vmem_limit = int(min(vmem_cap, max(4 * tile_bytes + (2 << 20), 16 << 20)))

    # Metadata-only reshape of the contiguous buffer to the lane-dense view.
    x2 = x.reshape(rows, cols)
    grid = (rows // tb, cols // tf)

    out2 = pl.pallas_call(
        _copy_kernel,
        out_shape=jax.ShapeDtypeStruct((rows, cols), x.dtype),
        grid_spec=pltpu.PrefetchScalarGridSpec(
            num_scalar_prefetch=0,
            grid=grid,
            in_specs=[pl.BlockSpec((tb, tf), lambda i, j: (i, j))],
            out_specs=pl.BlockSpec((tb, tf), lambda i, j: (i, j)),
        ),
        compiler_params=pltpu.CompilerParams(
            dimension_semantics=("parallel", "parallel"),
            vmem_limit_bytes=vmem_limit,
        ),
        cost_estimate=pl.CostEstimate(
            flops=0, transcendentals=0, bytes_accessed=2 * total * itemsize),
        input_output_aliases=({0: 0} if donate else {}),
    )(x2)

    # Metadata-only reshape back to the torch .view(N, -1) shape.
    return out2.reshape(n, flat)


if __name__ == "__main__":
    key = jax.random.PRNGKey(0)

    # Primary case: small NCHW conv feature map, batch not sublane-aligned
    # (exercises the lane-dense reinterpreted-view path).
    x = jax.random.normal(key, (2, 4, 16, 16), dtype=jnp.float32)
    ref = x.reshape(x.shape[0], -1)
    out = jax.block_until_ready(flatten(x))
    assert out.shape == (2, 4 * 16 * 16), out.shape
    assert out.dtype == x.dtype
    assert bool(jnp.array_equal(out, ref))

    # Fully aligned path (n % 8 == 0, flat % 128 == 0).
    xa = jax.random.normal(jax.random.PRNGKey(1), (8, 4, 8, 16), dtype=jnp.float32)
    assert bool(jnp.array_equal(jax.block_until_ready(flatten(xa)),
                                xa.reshape(8, -1)))

    # bf16 path (dtype-aware sublane unit of 16) via the reinterpreted view.
    xb = jax.random.normal(jax.random.PRNGKey(2), (4, 4, 16, 16)).astype(jnp.bfloat16)
    assert bool(jnp.array_equal(jax.block_until_ready(flatten(xb)),
                                xb.reshape(4, -1)))

    # Ragged fallback (total elements not a multiple of 128): full-extent blocks.
    xc = jax.random.normal(jax.random.PRNGKey(3), (2, 3, 5, 7), dtype=jnp.float32)
    assert bool(jnp.array_equal(jax.block_until_ready(flatten(xc)),
                                xc.reshape(2, -1)))

    print("KERNEL_OK")
</pallas_src>

<mosaic_0001>
module attributes {stable_mosaic.version = 11 : i64} {
  func.func @_copy_kernel(%arg0: i32, %arg1: i32, %arg2: memref<8x256xf32, #tpu.memory_space<vmem>>, %arg3: memref<8x256xf32, #tpu.memory_space<vmem>>) attributes {dimension_semantics = [#tpu.dimension_semantics<parallel>, #tpu.dimension_semantics<parallel>], iteration_bounds = array<i64: 1, 1>, scalar_prefetch = 0 : i64, scratch_operands = 0 : i64, tpu.core_type = #tpu.core_type<tc>, window_params = [{transform_indices = @transform_0, window_bounds = array<i64: 8, 256>}, {transform_indices = @transform_1, window_bounds = array<i64: 8, 256>}]} {
    %c0 = arith.constant 0 : index
    %c0_0 = arith.constant 0 : index
    %0 = vector.load %arg2[%c0, %c0_0] : memref<8x256xf32, #tpu.memory_space<vmem>>, vector<8x256xf32>
    %c0_1 = arith.constant 0 : index
    %c0_2 = arith.constant 0 : index
    %1 = vector.load %arg3[%c0_1, %c0_2] : memref<8x256xf32, #tpu.memory_space<vmem>>, vector<8x256xf32>
    tpu.vector_store %arg3[%c0_1, %c0_2], %0 {strides = array<i32>} : memref<8x256xf32, #tpu.memory_space<vmem>>, vector<8x256xf32>,
    return
  }
  func.func @transform_0(%arg0: i32, %arg1: i32) -> (i32, i32) {
    %c0_i32 = arith.constant 0 : i32
    return %arg0, %arg1 : i32, i32
  }
  func.func @transform_1(%arg0: i32, %arg1: i32) -> (i32, i32) {
    %c0_i32 = arith.constant 0 : i32
    return %arg0, %arg1 : i32, i32
  }
}

</mosaic_0001>

<llo_original>
// kernel: tpu_custom_call.1
$region0: #{tpu_custom_call.1}
  #allocation0 [shape = 'u32[]', space=smem, size = 0x4, offset = 0x4, fixed_abs, tag = 'smem constant byte address 0x4 - core index']
  #allocation1 [shape = 'u32[144,128]{1,0:T(1,128)}', space=vmem, size = 0x12000, scoped, tag = 'internal scratch']
  %s0 = inlined_call_operand.hbm [shape: f32[8,256], index: 0, kind: input, shape index: {}]
  %s1 = inlined_call_operand.hbm [shape: f32[8,256], index: 1, kind: output, shape index: {}]
  %s2 = sld [smem:[#allocation0]]
  $region18: #{tpu_custom_call.1} parent=0
    _
  %s4 = ssub.s32 1, %s2
  %s5 = scalar_select 0, %s4, %s2
  $region1: #{tpu_custom_call.1} parent=0
    #allocation2 [shape = 'u8[8192]{0}', space=vmem, size = 0x2000, scoped, tag = 'input window, operand 0, single buffered']
    #allocation3 [shape = 's32[1]{0}', space=sflag, size = 0x4, scoped, tag = 'scoped memory for tpu_custom_call.1']
    #allocation4 [shape = 's32[1]{0}', space=sflag, size = 0x4, scoped, tag = 'scoped memory for tpu_custom_call.1']
    #allocation5 [shape = 'u8[8192]{0}', space=vmem, size = 0x2000, scoped, tag = 'output window, operand 0, single buffered']
    %6 = vsyncpa [#allocation3], 0
    %7 = vsyncpa [#allocation4], 0
    // Predicated region
    $region2: #{tpu_custom_call.1} parent=1 // pred_check
      _
    $region3: #{tpu_custom_call.1} parent=1 // pred_check_branch
      %9 = sbr.rel (0) target = $region5
    $region4: #{tpu_custom_call.1} parent=1 // pred_region
      %s11 = ssub.s32 256, 256
      %12 = vsyncadd [#allocation3], %s11
      %s14 = sshll.u32 [#allocation2], 4
      %s15 = int_to_ptr.vmem [resolvable:$true] %s14
      %17 = dma.hbm_to_vmem [thread:$0]  %s0, 256, %s15, [#allocation3]
    $region5: #{tpu_custom_call.1} parent=1 // pred_fallthru
      _
    // Predicated region
    $region6: #{tpu_custom_call.1} parent=1 // pred_check
      _
    $region7: #{tpu_custom_call.1} parent=1 // pred_check_branch
      %19 = sbr.rel (0) target = $region9
    $region8: #{tpu_custom_call.1} parent=1 // pred_region
      %20 = dma.done [#allocation3], 256
    $region9: #{tpu_custom_call.1} parent=1 // pred_fallthru
      _
    %v21 = vld [vmem:[#allocation2] sm:$0xff]
    %v22 = vld [vmem:[#allocation2 + $0x8] sm:$0xff]
    %23 = vst [vmem:[#allocation5] sm:$0xff] %v21
    %24 = vst [vmem:[#allocation5 + $0x8] sm:$0xff] %v22
    // Predicated region
    $region10: #{tpu_custom_call.1} parent=1 // pred_check
      _
    $region11: #{tpu_custom_call.1} parent=1 // pred_check_branch
      %26 = sbr.rel (0) target = $region13
    $region12: #{tpu_custom_call.1} parent=1 // pred_region
      %s28 = ssub.s32 256, 256
      %29 = vsyncadd [#allocation4], %s28
      %s31 = sshll.u32 [#allocation5], 4
      %s32 = int_to_ptr.vmem [resolvable:$true] %s31
      %34 = dma.vmem_to_hbm [thread:$0]  %s32, 256, %s1, [#allocation4]
    $region13: #{tpu_custom_call.1} parent=1 // pred_fallthru
      _
    // Predicated region
    $region14: #{tpu_custom_call.1} parent=1 // pred_check
      _
    $region15: #{tpu_custom_call.1} parent=1 // pred_check_branch
      %36 = sbr.rel (0) target = $region17
    $region16: #{tpu_custom_call.1} parent=1 // pred_region
      %37 = dma.done [#allocation4], 256
    $region17: #{tpu_custom_call.1} parent=1 // pred_fallthru
      _
    %38 = vsyncpa [#allocation3], 1
    %39 = vsyncpa [#allocation4], 1

</llo_original>
